<compile_context>
chip_gen: v7x
topology: tpu7x:2x2x1
jax: 0.10.0
libtpu: 0.0.40
codegen_flags: <defaults>
</compile_context>

<pallas_src>
import functools

import jax
import jax.numpy as jnp
from jax.experimental import pallas as pl
from jax.experimental.pallas import tpu as pltpu


def _round_up(x, m):
    return (x + m - 1) // m * m


def _pick_tile_h(H, W, cin, cout_p, kh, kw, in_bytes, budget_bytes=4 * 1024 * 1024):
    """Largest divisor of H whose (double-buffered) tile footprint fits the budget.

    Budget is conservative so the default scoped-VMEM limit is enough on
    v5e (16 MiB) / v6e (32 MiB) / v7x (32 MiB of 64 MiB physical).
    """
    best = 1
    for th in range(1, H + 1):
        if H % th:
            continue
        tile = ((th + kh - 1) * (W + kw - 1) * cin * in_bytes   # halo'd input tile
                + th * W * kh * kw * cin * in_bytes             # in-kernel im2col patches
                + th * W * cout_p * 4)                          # f32 acc / output tile
        if 2 * tile <= budget_bytes:                            # double-buffered
            best = th
    return best


def _conv_bn_relu_kernel(xt_ref, w_ref, b_ref, o_ref, *, KH, KW):
    # xt_ref: (1, 1, TH+KH-1, W+KW-1, Cin)  bf16, halo'd input row-band (NHWC)
    # w_ref : (KH*KW*Cin, Cout_p)           bf16, BN scale pre-folded
    # b_ref : (1, Cout_p)                   f32, folded BN bias
    # o_ref : (1, TH, W, Cout_p)            f32
    _, th, w_out, cout_p = o_ref.shape
    cin = xt_ref.shape[-1]

    xt = xt_ref[0, 0]                                  # (TH+KH-1, W+KW-1, Cin)

    # In-kernel im2col: concatenate the KH*KW shifted windows along the channel
    # (lane) axis, then a single MXU matmul with K = KH*KW*Cin.
    cols = []
    for dh in range(KH):
        rows = xt[dh:dh + th]                          # leading-dim slice (cheap)
        for dw in range(KW):
            cols.append(rows[:, dw:dw + w_out, :])     # (TH, W, Cin)
    patches = jnp.concatenate(cols, axis=-1)           # (TH, W, KH*KW*Cin)
    lhs = patches.reshape(th * w_out, KH * KW * cin)

    acc = jnp.dot(lhs, w_ref[...], preferred_element_type=jnp.float32)  # (TH*W, Cout_p)

    y = jnp.maximum(acc + b_ref[0], 0.0)               # fused BN bias + ReLU, f32
    o_ref[0] = y.reshape(th, w_out, cout_p).astype(o_ref.dtype)


def conv_bn_relu(x_nchw, weight_oihw, gamma, beta, running_mean, running_var,
                 eps=1e-5, compute_dtype=jnp.bfloat16):
    """ConvBNReLU forward (eval-mode BN). x_nchw: (N, Cin, H, W) f32 -> (N, Cout, H, W) f32."""
    N, Cin, H, W = x_nchw.shape
    Cout, Cin_w, KH, KW = weight_oihw.shape
    assert Cin == Cin_w
    # Module defaults: ks=3, stride=1, padding=ks//2 ("same"). Assert instead of silently assuming.
    assert KH == KW and KH % 2 == 1, "kernel assumes square, odd kernel size with 'same' padding"
    pad = KH // 2

    Cout_p = _round_up(Cout, 128)                      # lane-dense output channels

    # ---- BN folding (f32) + fold scale into the conv weight ----
    scale = gamma / jnp.sqrt(running_var + eps)                          # (Cout,)
    bias = (beta - running_mean * scale).astype(jnp.float32)             # (Cout,)

    w = weight_oihw.astype(jnp.float32) * scale[:, None, None, None]     # OIHW, scaled
    w = jnp.transpose(w, (2, 3, 1, 0))                                   # -> (KH, KW, Cin, Cout)
    w = jnp.pad(w, ((0, 0), (0, 0), (0, 0), (0, Cout_p - Cout)))
    w_flat = w.reshape(KH * KW * Cin, Cout_p).astype(compute_dtype)      # (K, Cout_p)

    bias_p = jnp.pad(bias, (0, Cout_p - Cout)).reshape(1, Cout_p)

    # ---- layout / padding / H-tiling with halo (fused by XLA into one pass) ----
    x = jnp.transpose(x_nchw, (0, 2, 3, 1)).astype(compute_dtype)        # NCHW -> NHWC
    x_pad = jnp.pad(x, ((0, 0), (pad, pad), (pad, pad), (0, 0)))
    Wp = W + KW - 1

    in_bytes = jnp.dtype(compute_dtype).itemsize
    TH = _pick_tile_h(H, W, Cin, Cout_p, KH, KW, in_bytes)
    NT = H // TH
    THh = TH + KH - 1
    if NT == 1:
        x_tiles = x_pad[:, None]                                         # (N, 1, Hp, Wp, Cin)
    else:
        x_tiles = jnp.stack([x_pad[:, t * TH: t * TH + THh] for t in range(NT)],
                            axis=1)                                      # (N, NT, THh, Wp, Cin)

    kernel = functools.partial(_conv_bn_relu_kernel, KH=KH, KW=KW)

    out = pl.pallas_call(
        kernel,
        out_shape=jax.ShapeDtypeStruct((N, H, W, Cout_p), jnp.float32),
        grid_spec=pltpu.PrefetchScalarGridSpec(
            num_scalar_prefetch=0,
            grid=(N, NT),
            in_specs=[
                pl.BlockSpec((1, 1, THh, Wp, Cin), lambda n, t: (n, t, 0, 0, 0)),
                pl.BlockSpec((KH * KW * Cin, Cout_p), lambda n, t: (0, 0)),
                pl.BlockSpec((1, Cout_p), lambda n, t: (0, 0)),
            ],
            out_specs=pl.BlockSpec((1, TH, W, Cout_p), lambda n, t: (n, t, 0, 0)),
        ),
        compiler_params=pltpu.CompilerParams(
            dimension_semantics=("parallel", "parallel")),
    )(x_tiles, w_flat, bias_p)

    out = out[..., :Cout]                                                # drop channel padding
    return jnp.transpose(out, (0, 3, 1, 2))                              # NHWC -> NCHW


def _reference(x, w, gamma, beta, mean, var, eps=1e-5):
    y = jax.lax.conv_general_dilated(
        x, w, window_strides=(1, 1), padding=((1, 1), (1, 1)),
        dimension_numbers=("NCHW", "OIHW", "NCHW"))
    scale = (gamma / jnp.sqrt(var + eps)).reshape(1, -1, 1, 1)
    bias = (beta - mean * gamma / jnp.sqrt(var + eps)).reshape(1, -1, 1, 1)
    return jnp.maximum(y * scale + bias, 0.0)


if __name__ == "__main__":
    key = jax.random.PRNGKey(0)
    k_x, k_w, k_g, k_b, k_m, k_v = jax.random.split(key, 6)

    N, Cin, H, W = 2, 4, 16, 16
    Cout, KS = 8, 3

    x = jax.random.normal(k_x, (N, Cin, H, W), dtype=jnp.float32)
    weight = jax.random.normal(k_w, (Cout, Cin, KS, KS), dtype=jnp.float32) * 0.1
    gamma = 1.0 + 0.1 * jax.random.normal(k_g, (Cout,), dtype=jnp.float32)
    beta = 0.1 * jax.random.normal(k_b, (Cout,), dtype=jnp.float32)
    running_mean = 0.05 * jax.random.normal(k_m, (Cout,), dtype=jnp.float32)
    running_var = jnp.abs(1.0 + 0.1 * jax.random.normal(k_v, (Cout,), dtype=jnp.float32))

    out = conv_bn_relu(x, weight, gamma, beta, running_mean, running_var)
    out = jax.block_until_ready(out)

    ref = _reference(x, weight, gamma, beta, running_mean, running_var)
    assert out.shape == (N, Cout, H, W)
    # bf16 inputs / f32 accumulation -> slightly looser tolerance than pure f32.
    max_err = float(jnp.max(jnp.abs(out - ref)))
    assert jnp.allclose(out, ref, atol=3e-2, rtol=3e-2), f"mismatch vs reference (max abs err {max_err})"

    print("KERNEL_OK")
</pallas_src>

<mosaic_0001>
module attributes {stable_mosaic.version = 11 : i64} {
  func.func @_conv_bn_relu_kernel(%arg0: i32, %arg1: i32, %arg2: memref<1x1x18x18x4xbf16, #tpu.memory_space<vmem>>, %arg3: memref<36x128xbf16, #tpu.memory_space<vmem>>, %arg4: memref<1x128xf32, #tpu.memory_space<vmem>>, %arg5: memref<1x16x16x128xf32, #tpu.memory_space<vmem>>) attributes {dimension_semantics = [#tpu.dimension_semantics<parallel>, #tpu.dimension_semantics<parallel>], iteration_bounds = array<i64: 2, 1>, scalar_prefetch = 0 : i64, scratch_operands = 0 : i64, tpu.core_type = #tpu.core_type<tc>, window_params = [{transform_indices = @transform_0, window_bounds = array<i64: 1, 1, 18, 18, 4>}, {pipeline_mode = #tpu.pipeline_mode<synchronous>, transform_indices = @transform_1, window_bounds = array<i64: 36, 128>}, {pipeline_mode = #tpu.pipeline_mode<synchronous>, transform_indices = @transform_2, window_bounds = array<i64: 1, 128>}, {transform_indices = @transform_3, window_bounds = array<i64: 1, 16, 16, 128>}]} {
    %c0 = arith.constant 0 : index
    %c0_0 = arith.constant 0 : index
    %c0_1 = arith.constant 0 : index
    %c0_2 = arith.constant 0 : index
    %c0_3 = arith.constant 0 : index
    %0 = vector.load %arg2[%c0, %c0_0, %c0_1, %c0_2, %c0_3] : memref<1x1x18x18x4xbf16, #tpu.memory_space<vmem>>, vector<1x1x18x18x4xbf16>
    %1 = vector.shape_cast %0 : vector<1x1x18x18x4xbf16> to vector<18x18x4xbf16>
    %2 = vector.extract_strided_slice %1 {offsets = [0, 0, 0], sizes = [16, 18, 4], strides = [1, 1, 1]} : vector<18x18x4xbf16> to vector<16x18x4xbf16>
    %3 = vector.extract_strided_slice %2 {offsets = [0, 0, 0], sizes = [16, 16, 4], strides = [1, 1, 1]} : vector<16x18x4xbf16> to vector<16x16x4xbf16>
    %4 = vector.extract_strided_slice %2 {offsets = [0, 1, 0], sizes = [16, 16, 4], strides = [1, 1, 1]} : vector<16x18x4xbf16> to vector<16x16x4xbf16>
    %5 = vector.extract_strided_slice %2 {offsets = [0, 2, 0], sizes = [16, 16, 4], strides = [1, 1, 1]} : vector<16x18x4xbf16> to vector<16x16x4xbf16>
    %6 = vector.extract_strided_slice %1 {offsets = [1, 0, 0], sizes = [16, 18, 4], strides = [1, 1, 1]} : vector<18x18x4xbf16> to vector<16x18x4xbf16>
    %7 = vector.extract_strided_slice %6 {offsets = [0, 0, 0], sizes = [16, 16, 4], strides = [1, 1, 1]} : vector<16x18x4xbf16> to vector<16x16x4xbf16>
    %8 = vector.extract_strided_slice %6 {offsets = [0, 1, 0], sizes = [16, 16, 4], strides = [1, 1, 1]} : vector<16x18x4xbf16> to vector<16x16x4xbf16>
    %9 = vector.extract_strided_slice %6 {offsets = [0, 2, 0], sizes = [16, 16, 4], strides = [1, 1, 1]} : vector<16x18x4xbf16> to vector<16x16x4xbf16>
    %10 = vector.extract_strided_slice %1 {offsets = [2, 0, 0], sizes = [16, 18, 4], strides = [1, 1, 1]} : vector<18x18x4xbf16> to vector<16x18x4xbf16>
    %11 = vector.extract_strided_slice %10 {offsets = [0, 0, 0], sizes = [16, 16, 4], strides = [1, 1, 1]} : vector<16x18x4xbf16> to vector<16x16x4xbf16>
    %12 = vector.extract_strided_slice %10 {offsets = [0, 1, 0], sizes = [16, 16, 4], strides = [1, 1, 1]} : vector<16x18x4xbf16> to vector<16x16x4xbf16>
    %13 = vector.extract_strided_slice %10 {offsets = [0, 2, 0], sizes = [16, 16, 4], strides = [1, 1, 1]} : vector<16x18x4xbf16> to vector<16x16x4xbf16>
    %14 = tpu.concatenate %3, %4, %5, %7, %8, %9, %11, %12, %13 in 2 : vector<16x16x4xbf16>, vector<16x16x4xbf16>, vector<16x16x4xbf16>, vector<16x16x4xbf16>, vector<16x16x4xbf16>, vector<16x16x4xbf16>, vector<16x16x4xbf16>, vector<16x16x4xbf16>, vector<16x16x4xbf16> -> vector<16x16x36xbf16>
    %15 = vector.shape_cast %14 : vector<16x16x36xbf16> to vector<256x36xbf16>
    %c0_4 = arith.constant 0 : index
    %c0_5 = arith.constant 0 : index
    %16 = vector.load %arg3[%c0_4, %c0_5] : memref<36x128xbf16, #tpu.memory_space<vmem>>, vector<36x128xbf16>
    %cst = arith.constant dense<0.000000e+00> : vector<256x128xf32>
    %17 = tpu.matmul %15, %16, %cst {dimension_numbers = #tpu.dot_dimension_numbers<[1], [0], [0], [1], [0, 0, 1, 1], [], []>} : vector<256x36xbf16>, vector<36x128xbf16>, vector<256x128xf32> -> vector<256x128xf32>
    %c0_6 = arith.constant 0 : index
    %c0_7 = arith.constant 0 : index
    %18 = vector.load %arg4[%c0_6, %c0_7] : memref<1x128xf32, #tpu.memory_space<vmem>>, vector<1x128xf32>
    %19 = vector.shape_cast %18 : vector<1x128xf32> to vector<128xf32>
    %20 = vector.shape_cast %19 : vector<128xf32> to vector<1x128xf32>
    %21 = vector.broadcast %20 : vector<1x128xf32> to vector<256x128xf32>
    %22 = arith.addf %17, %21 : vector<256x128xf32>
    %cst_8 = arith.constant 0.000000e+00 : f32
    %23 = vector.broadcast %cst_8 : f32 to vector<256x128xf32>
    %24 = arith.maximumf %22, %23 : vector<256x128xf32>
    %25 = vector.shape_cast %24 : vector<256x128xf32> to vector<16x16x128xf32>
    %c0_9 = arith.constant 0 : index
    %c0_10 = arith.constant 0 : index
    %c0_11 = arith.constant 0 : index
    %c0_12 = arith.constant 0 : index
    %26 = vector.load %arg5[%c0_9, %c0_10, %c0_11, %c0_12] : memref<1x16x16x128xf32, #tpu.memory_space<vmem>>, vector<1x16x16x128xf32>
    %27 = vector.shape_cast %26 : vector<1x16x16x128xf32> to vector<16x16x128xf32>
    %28 = vector.shape_cast %25 : vector<16x16x128xf32> to vector<1x16x16x128xf32>
    tpu.vector_store %arg5[%c0_9, %c0_10, %c0_11, %c0_12], %28 {strides = array<i32>} : memref<1x16x16x128xf32, #tpu.memory_space<vmem>>, vector<1x16x16x128xf32>,
    return
  }
  func.func @transform_0(%arg0: i32, %arg1: i32) -> (i32, i32, i32, i32, i32) {
    %c0_i32 = arith.constant 0 : i32
    %c0_i32_0 = arith.constant 0 : i32
    %c0_i32_1 = arith.constant 0 : i32
    %c0_i32_2 = arith.constant 0 : i32
    return %arg0, %arg1, %c0_i32, %c0_i32_0, %c0_i32_1 : i32, i32, i32, i32, i32
  }
  func.func @transform_1(%arg0: i32, %arg1: i32) -> (i32, i32) {
    %c0_i32 = arith.constant 0 : i32
    %c0_i32_0 = arith.constant 0 : i32
    %c0_i32_1 = arith.constant 0 : i32
    return %c0_i32, %c0_i32_0 : i32, i32
  }
  func.func @transform_2(%arg0: i32, %arg1: i32) -> (i32, i32) {
    %c0_i32 = arith.constant 0 : i32
    %c0_i32_0 = arith.constant 0 : i32
    %c0_i32_1 = arith.constant 0 : i32
    return %c0_i32, %c0_i32_0 : i32, i32
  }
  func.func @transform_3(%arg0: i32, %arg1: i32) -> (i32, i32, i32, i32) {
    %c0_i32 = arith.constant 0 : i32
    %c0_i32_0 = arith.constant 0 : i32
    %c0_i32_1 = arith.constant 0 : i32
    return %arg0, %arg1, %c0_i32, %c0_i32_0 : i32, i32, i32, i32
  }
}

</mosaic_0001>

<llo_original>
// kernel: tpu_custom_call.1
$region0: #{tpu_custom_call.1}
  #allocation0 [shape = 'u32[]', space=smem, size = 0x4, offset = 0x4, fixed_abs, tag = 'smem constant byte address 0x4 - core index']
  #allocation1 [shape = 'u32[144,128]{1,0:T(1,128)}', space=vmem, size = 0x12000, scoped, tag = 'internal scratch']
  %s0 = inlined_call_operand.vmem [shape: bf16[2,1,18,18,4], index: 0, kind: input, shape index: {}]
  %s1 = inlined_call_operand.vmem [shape: bf16[36,128], index: 1, kind: input, shape index: {}]
  %s2 = inlined_call_operand.vmem [shape: f32[1,128], index: 2, kind: input, shape index: {}]
  %s3 = inlined_call_operand.hbm [shape: f32[2,16,16,128], index: 3, kind: output, shape index: {}]
  %s4 = sld [smem:[#allocation0]]
  $region45: #{tpu_custom_call.1} parent=0
    _
  %s6 = ssub.s32 1, %s4
  %s7 = scalar_select 0, %s6, %s4
  $region1: #{tpu_custom_call.1} parent=0
    #allocation2 [shape = 'u8[262144]{0}', space=vmem, size = 0x40000, scoped, tag = 'output window, operand 0']
    #allocation3 [shape = 's32[2]{0}', space=sflag, size = 0x8, scoped, tag = 'scoped memory for tpu_custom_call.1']
    %8 = vsyncpa [#allocation3], 0
    %s9 = scalar_lea.sflag [#allocation3], 1
    %10 = vsyncpa %s9, 0
    loop: start=0, step=1, limit=4
    $region2: #{tpu_custom_call.1} parent=1 // loop_pre_header
      _
    $region3: #{tpu_custom_call.1} parent=1 // loop_header
      %s12 = sphi 0, %s16
      %p13 = scmp.ge.s32.totalorder %s12, 4
      %s19 = sphi 0, %s31
      %s20 = sphi 0, %s27
      %s21 = sphi 0, %s19
      %s22 = sphi 0, %s20
      %s23 = sphi 0, %s21
      %s24 = sphi 0, %s22
      %s36 = sphi 0, %s38
      %s39 = sphi 0, %s36
      %s40 = sphi 0, %s39
      %s56 = sphi 0, %s40
      %s60 = sphi 0, %s60
      %s62 = sphi 0, %s60
      %s63 = sphi 0, %s62
      %s77 = sphi 0, %s63
      %s81 = sphi 0, %s81
      %s83 = sphi 0, %s81
      %s84 = sphi 0, %s83
      %s98 = sphi 0, %s84
      %s106 = sphi 0, %s108
      %s109 = sphi 0, %s106
      %s110 = sphi 0, %s109
      %s126 = sphi 0, %s110
    $region4: #{tpu_custom_call.1} parent=1 // loop_header_branch
      %15 = sbr.rel (%p13) target = $region8
    $region5: #{tpu_custom_call.1} parent=1 // loop_body
      %s17 = ssub.s32 %s12, 1
      %s18 = ssub.s32 %s12, 2
      %s25 = sadd.s32 1, %s20
      %p26 = scmp.ge.s32.totalorder %s25, 1
      %s27 = scalar_select %p26, 0, %s25
      %s28 = sadd.s32 1, %s19
      %s29 = scalar_select %p26, %s28, %s19
      %p30 = scmp.ge.s32.totalorder %s29, 2
      %s31 = scalar_select %p30, 0, %s29
      %s32 = ssub.s32 %s19, %s31
      %s33 = ssub.s32 %s20, %s27
      %s34 = sor.u32 %s32, %s33
      %p35 = scmp.eq.s32.totalorder %s34, 0
      %s37 = sadd.s32 %s36, 1
      %s38 = scalar_select %p35, %s36, %s37
      %p41 = pneg %p35
      %p42 = scmp.eq.s32.totalorder %s12, 1
      %p43 = por %p41, %p42
      %p44 = scmp.ne.s32.totalorder %s36, %s39
      %p45 = scmp.eq.s32.totalorder %s12, 0
      %p46 = por %p44, %p45
      %p47 = scmp.ne.s32.totalorder %s36, %s39
      %p48 = scmp.eq.s32.totalorder %s17, 1
      %p49 = por %p47, %p48
      %p50 = scmp.ne.s32.totalorder %s39, %s40
      %p51 = scmp.eq.s32.totalorder %s17, 0
      %p52 = por %p50, %p51
      %p53 = scmp.ne.s32.totalorder %s39, %s40
      %p54 = scmp.eq.s32.totalorder %s18, 1
      %p55 = por %p53, %p54
      %p57 = scmp.ne.s32.totalorder %s40, %s56
      %p58 = scmp.eq.s32.totalorder %s18, 0
      %p59 = por %p57, %p58
      %s61 = sadd.s32 %s60, 1
      %p64 = scmp.eq.s32.totalorder %s12, 1
      %p65 = scmp.ne.s32.totalorder %s60, %s62
      %p66 = scmp.eq.s32.totalorder %s12, 0
      %p67 = por %p65, %p66
      %p68 = scmp.ne.s32.totalorder %s60, %s62
      %p69 = scmp.eq.s32.totalorder %s17, 1
      %p70 = por %p68, %p69
      %p71 = scmp.ne.s32.totalorder %s62, %s63
      %p72 = scmp.eq.s32.totalorder %s17, 0
      %p73 = por %p71, %p72
      %p74 = scmp.ne.s32.totalorder %s62, %s63
      %p75 = scmp.eq.s32.totalorder %s18, 1
      %p76 = por %p74, %p75
      %p78 = scmp.ne.s32.totalorder %s63, %s77
      %p79 = scmp.eq.s32.totalorder %s18, 0
      %p80 = por %p78, %p79
      %s82 = sadd.s32 %s81, 1
      %p85 = scmp.eq.s32.totalorder %s12, 1
      %p86 = scmp.ne.s32.totalorder %s81, %s83
      %p87 = scmp.eq.s32.totalorder %s12, 0
      %p88 = por %p86, %p87
      %p89 = scmp.ne.s32.totalorder %s81, %s83
      %p90 = scmp.eq.s32.totalorder %s17, 1
      %p91 = por %p89, %p90
      %p92 = scmp.ne.s32.totalorder %s83, %s84
      %p93 = scmp.eq.s32.totalorder %s17, 0
      %p94 = por %p92, %p93
      %p95 = scmp.ne.s32.totalorder %s83, %s84
      %p96 = scmp.eq.s32.totalorder %s18, 1
      %p97 = por %p95, %p96
      %p99 = scmp.ne.s32.totalorder %s84, %s98
      %p100 = scmp.eq.s32.totalorder %s18, 0
      %p101 = por %p99, %p100
      %s102 = ssub.s32 %s19, %s31
      %s103 = ssub.s32 %s20, %s27
      %s104 = sor.u32 %s102, %s103
      %p105 = scmp.eq.s32.totalorder %s104, 0
      %s107 = sadd.s32 %s106, 1
      %s108 = scalar_select %p105, %s106, %s107
      %p111 = pneg %p105
      %p112 = scmp.eq.s32.totalorder %s12, 1
      %p113 = por %p111, %p112
      %p114 = scmp.ne.s32.totalorder %s106, %s109
      %p115 = scmp.eq.s32.totalorder %s12, 0
      %p116 = por %p114, %p115
      %p117 = scmp.ne.s32.totalorder %s106, %s109
      %p118 = scmp.eq.s32.totalorder %s17, 1
      %p119 = por %p117, %p118
      %p120 = scmp.ne.s32.totalorder %s109, %s110
      %p121 = scmp.eq.s32.totalorder %s17, 0
      %p122 = por %p120, %p121
      %p123 = scmp.ne.s32.totalorder %s109, %s110
      %p124 = scmp.eq.s32.totalorder %s18, 1
      %p125 = por %p123, %p124
      %p127 = scmp.ne.s32.totalorder %s110, %s126
      %p128 = scmp.eq.s32.totalorder %s18, 0
      %p129 = por %p127, %p128
      %p130 = scmp.le.s32.totalorder 1, %s12
      %p131 = scmp.lt.s32.totalorder %s12, 3
      %p132 = pnand %p130, %p131
      %p133 = pneg %p132
      // Predicated region
      $region9: #{tpu_custom_call.1} parent=5 // pred_check
        _
      $region10: #{tpu_custom_call.1} parent=5 // pred_check_branch
        %135 = sbr.rel (%p132) target = $region12
      $region11: #{tpu_custom_call.1} parent=5 // pred_region
        %s136 = ssub.s32 %s12, 1
        // Predicated region
        $region13: #{tpu_custom_call.1} parent=11 // pred_check
          %p137 = pneg %p73
        $region14: #{tpu_custom_call.1} parent=11 // pred_check_branch
          %139 = sbr.rel (%p137) target = $region16
        $region15: #{tpu_custom_call.1} parent=11 // pred_region
          _
        $region16: #{tpu_custom_call.1} parent=11 // pred_fallthru
          _
        // Predicated region
        $region17: #{tpu_custom_call.1} parent=11 // pred_check
          %p140 = pneg %p94
        $region18: #{tpu_custom_call.1} parent=11 // pred_check_branch
          %142 = sbr.rel (%p140) target = $region20
        $region19: #{tpu_custom_call.1} parent=11 // pred_region
          _
        $region20: #{tpu_custom_call.1} parent=11 // pred_fallthru
          _
      $region12: #{tpu_custom_call.1} parent=5 // pred_fallthru
        _
      %p143 = scmp.lt.s32.totalorder %s12, 2
      // Predicated region
      $region21: #{tpu_custom_call.1} parent=5 // pred_check
        %p144 = pneg %p143
      $region22: #{tpu_custom_call.1} parent=5 // pred_check_branch
        %146 = sbr.rel (%p144) target = $region24
      $region23: #{tpu_custom_call.1} parent=5 // pred_region
        // Predicated region
        $region25: #{tpu_custom_call.1} parent=23 // pred_check
          %p147 = pneg %p46
        $region26: #{tpu_custom_call.1} parent=23 // pred_check_branch
          %149 = sbr.rel (%p147) target = $region28
        $region27: #{tpu_custom_call.1} parent=23 // pred_region
          %p150 = scmp.lt.s32.totalorder %s19, 1
          %s151 = scalar_select %p150, %s19, 1
          %p152 = scmp.lt.s32.totalorder %s20, 0
          %s153 = scalar_select %p152, %s20, 0
          %s154 = smul.addr %s153, 54
          %s155 = smul.addr %s151, 54
          %s156 = sadd.s32 %s154, %s155
          %s157 = smul.addr %s156, 4
          %s158 = scalar_lea.vmem %s0, %s157
        $region28: #{tpu_custom_call.1} parent=23 // pred_fallthru
          _
      $region24: #{tpu_custom_call.1} parent=5 // pred_fallthru
        _
      %p159 = scmp.le.s32.totalorder 1, %s12
      %p160 = scmp.lt.s32.totalorder %s12, 3
      %p161 = pnand %p159, %p160
      %p162 = pneg %p161
      // Predicated region
      $region29: #{tpu_custom_call.1} parent=5 // pred_check
        _
      $region30: #{tpu_custom_call.1} parent=5 // pred_check_branch
        %164 = sbr.rel (%p161) target = $region32
      $region31: #{tpu_custom_call.1} parent=5 // pred_region
        %s165 = ssub.s32 %s12, 1
        %p166 = scmp.lt.s32.totalorder %s21, 1
        %s167 = scalar_select %p166, %s21, 1
        %p168 = scmp.lt.s32.totalorder %s22, 0
        %s169 = scalar_select %p168, %s22, 0
        %s170 = smul.addr %s169, 54
        %s171 = smul.addr %s167, 54
        %s172 = sadd.s32 %s170, %s171
        %s173 = smul.addr %s172, 4
        %s174 = scalar_lea.vmem %s0, %s173
        %p175 = pneg %p52
        %p176 = pneg %p49
        %p177 = pneg %p73
        %p178 = pneg %p70
        %p179 = pneg %p94
        %p180 = pneg %p91
        %p181 = pneg %p122
        %p182 = pneg %p119
        %s183 = sand.u32 %s109, 1
        %s184 = scalar_lea.sflag [#allocation3], %s183
        %s185 = sand.u32 %s109, 1
        %s186 = smul.addr %s185, 256
        %s187 = scalar_lea.vmem [#allocation2], %s186
        %p188 = scmp.lt.s32.totalorder %s21, 1
        %s189 = scalar_select %p188, %s21, 1
        %p190 = scmp.lt.s32.totalorder %s22, 0
        %s191 = scalar_select %p190, %s22, 0
        %s192 = smul.addr %s191, 54
        %s193 = smul.addr %s189, 54
        %s194 = sadd.s32 %s192, %s193
        %s195 = smul.addr %s194, 4
        %s196 = scalar_lea.vmem %s0, %s195
        %s197 = smul.u32 16, %s22
        %v199 = vld [vmem:[%s196] sm:$0xf]
        %v200 = vld [vmem:[%s196 + $0x4] sm:$0xf]
        %v201 = vld [vmem:[%s196 + $0x8] sm:$0x1]
        %v202 = vld [vmem:[%s196 + $0xc] sm:$0xf]
        %v203 = vld [vmem:[%s196 + $0x10] sm:$0xf]
        %v204 = vld [vmem:[%s196 + $0x14] sm:$0x1]
        %v205 = vld [vmem:[%s196 + $0x18] sm:$0xf]
        %v206 = vld [vmem:[%s196 + $0x1c] sm:$0xf]
        %v207 = vld [vmem:[%s196 + $0x20] sm:$0x1]
        %v208 = vld [vmem:[%s196 + $0x24] sm:$0xf]
        %v209 = vld [vmem:[%s196 + $0x28] sm:$0xf]
        %v210 = vld [vmem:[%s196 + $0x2c] sm:$0x1]
        %v211 = vld [vmem:[%s196 + $0x30] sm:$0xf]
        %v212 = vld [vmem:[%s196 + $0x34] sm:$0xf]
        %v213 = vld [vmem:[%s196 + $0x38] sm:$0x1]
        %v214 = vld [vmem:[%s196 + $0x3c] sm:$0xf]
        %v215 = vld [vmem:[%s196 + $0x40] sm:$0xf]
        %v216 = vld [vmem:[%s196 + $0x44] sm:$0x1]
        %v217 = vld [vmem:[%s196 + $0x48] sm:$0xf]
        %v218 = vld [vmem:[%s196 + $0x4c] sm:$0xf]
        %v219 = vld [vmem:[%s196 + $0x50] sm:$0x1]
        %v220 = vld [vmem:[%s196 + $0x54] sm:$0xf]
        %v221 = vld [vmem:[%s196 + $0x58] sm:$0xf]
        %v222 = vld [vmem:[%s196 + $0x5c] sm:$0x1]
        %v223 = vld [vmem:[%s196 + $0x60] sm:$0xf]
        %v224 = vld [vmem:[%s196 + $0x64] sm:$0xf]
        %v225 = vld [vmem:[%s196 + $0x68] sm:$0x1]
        %v226 = vld [vmem:[%s196 + $0x6c] sm:$0xf]
        %v227 = vld [vmem:[%s196 + $0x70] sm:$0xf]
        %v228 = vld [vmem:[%s196 + $0x74] sm:$0x1]
        %v229 = vld [vmem:[%s196 + $0x78] sm:$0xf]
        %v230 = vld [vmem:[%s196 + $0x7c] sm:$0xf]
        %v231 = vld [vmem:[%s196 + $0x80] sm:$0x1]
        %v232 = vld [vmem:[%s196 + $0x84] sm:$0xf]
        %v233 = vld [vmem:[%s196 + $0x88] sm:$0xf]
        %v234 = vld [vmem:[%s196 + $0x8c] sm:$0x1]
        %v235 = vld [vmem:[%s196 + $0x90] sm:$0xf]
        %v236 = vld [vmem:[%s196 + $0x94] sm:$0xf]
        %v237 = vld [vmem:[%s196 + $0x98] sm:$0x1]
        %v238 = vld [vmem:[%s196 + $0x9c] sm:$0xf]
        %v239 = vld [vmem:[%s196 + $0xa0] sm:$0xf]
        %v240 = vld [vmem:[%s196 + $0xa4] sm:$0x1]
        %v241 = vld [vmem:[%s196 + $0xa8] sm:$0xf]
        %v242 = vld [vmem:[%s196 + $0xac] sm:$0xf]
        %v243 = vld [vmem:[%s196 + $0xb0] sm:$0x1]
        %v244 = vld [vmem:[%s196 + $0xb4] sm:$0xf]
        %v245 = vld [vmem:[%s196 + $0xb8] sm:$0xf]
        %v246 = vld [vmem:[%s196 + $0xbc] sm:$0x1]
        %v247 = vld [vmem:[%s196 + $0xc0] sm:$0xf]
        %v248 = vld [vmem:[%s196 + $0xc4] sm:$0xf]
        %v249 = vld [vmem:[%s196 + $0xc8] sm:$0x1]
        %v250 = vld [vmem:[%s196 + $0xcc] sm:$0xf]
        %v251 = vld [vmem:[%s196 + $0xd0] sm:$0xf]
        %v252 = vld [vmem:[%s196 + $0xd4] sm:$0x1]
        %v285 = vunpack.c.l.b16 %v199
        %v286 = vunpack.c.l.b16 %v200
        %v287 = vunpack.c.l.b16 %v202
        %v288 = vunpack.c.l.b16 %v203
        %v289 = vunpack.c.l.b16 %v205
        %v290 = vunpack.c.l.b16 %v206
        %v291 = vunpack.c.l.b16 %v208
        %v292 = vunpack.c.l.b16 %v209
        %v293 = vunpack.c.l.b16 %v211
        %v294 = vunpack.c.l.b16 %v212
        %v295 = vunpack.c.l.b16 %v214
        %v296 = vunpack.c.l.b16 %v215
        %v297 = vunpack.c.l.b16 %v217
        %v298 = vunpack.c.l.b16 %v218
        %v299 = vunpack.c.l.b16 %v220
        %v300 = vunpack.c.l.b16 %v221
        %v301 = vunpack.c.l.b16 %v223
        %v302 = vunpack.c.l.b16 %v224
        %v303 = vunpack.c.l.b16 %v226
        %v304 = vunpack.c.l.b16 %v227
        %v305 = vunpack.c.l.b16 %v229
        %v306 = vunpack.c.l.b16 %v230
        %v307 = vunpack.c.l.b16 %v232
        %v308 = vunpack.c.l.b16 %v233
        %v309 = vunpack.c.l.b16 %v235
        %v310 = vunpack.c.l.b16 %v236
        %v311 = vunpack.c.l.b16 %v238
        %v312 = vunpack.c.l.b16 %v239
        %v313 = vunpack.c.l.b16 %v241
        %v314 = vunpack.c.l.b16 %v242
        %v315 = vunpack.c.l.b16 %v244
        %v316 = vunpack.c.l.b16 %v245
        %v317 = vpack.c.b16 %v286, %v285
        %v318 = vpack.c.b16 %v288, %v287
        %v319 = vpack.c.b16 %v290, %v289
        %v320 = vpack.c.b16 %v292, %v291
        %v321 = vpack.c.b16 %v294, %v293
        %v322 = vpack.c.b16 %v296, %v295
        %v323 = vpack.c.b16 %v298, %v297
        %v324 = vpack.c.b16 %v300, %v299
        %v325 = vpack.c.b16 %v302, %v301
        %v326 = vpack.c.b16 %v304, %v303
        %v327 = vpack.c.b16 %v306, %v305
        %v328 = vpack.c.b16 %v308, %v307
        %v329 = vpack.c.b16 %v310, %v309
        %v330 = vpack.c.b16 %v312, %v311
        %v331 = vpack.c.b16 %v314, %v313
        %v332 = vpack.c.b16 %v316, %v315
        %v349 = vunpack.c.l.b16 %v201
        %v350 = vunpack.c.l.b16 %v204
        %v351 = vunpack.c.l.b16 %v207
        %v352 = vunpack.c.l.b16 %v210
        %v353 = vunpack.c.l.b16 %v213
        %v354 = vunpack.c.l.b16 %v216
        %v355 = vunpack.c.l.b16 %v219
        %v356 = vunpack.c.l.b16 %v222
        %v357 = vunpack.c.l.b16 %v225
        %v358 = vunpack.c.l.b16 %v228
        %v359 = vunpack.c.l.b16 %v231
        %v360 = vunpack.c.l.b16 %v234
        %v361 = vunpack.c.l.b16 %v237
        %v362 = vunpack.c.l.b16 %v240
        %v363 = vunpack.c.l.b16 %v243
        %v364 = vunpack.c.l.b16 %v246
        %v365 = vpack.c.b16 %v349, %v349
        %v366 = vpack.c.b16 %v350, %v350
        %v367 = vpack.c.b16 %v351, %v351
        %v368 = vpack.c.b16 %v352, %v352
        %v369 = vpack.c.b16 %v353, %v353
        %v370 = vpack.c.b16 %v354, %v354
        %v371 = vpack.c.b16 %v355, %v355
        %v372 = vpack.c.b16 %v356, %v356
        %v373 = vpack.c.b16 %v357, %v357
        %v374 = vpack.c.b16 %v358, %v358
        %v375 = vpack.c.b16 %v359, %v359
        %v376 = vpack.c.b16 %v360, %v360
        %v377 = vpack.c.b16 %v361, %v361
        %v378 = vpack.c.b16 %v362, %v362
        %v379 = vpack.c.b16 %v363, %v363
        %v380 = vpack.c.b16 %v364, %v364
        %vm381 = vsmask.f32 7424
        %v383 = vshrl.u32 %v317, 16
        %v385 = vshll.u32 %v317, 16
        %v387 = vrot.slane %v385, 1
        %v388 = vor.u32 %v383, %v387
        %v390 = vshll.u32 %v365, 16
        %v392 = vrot.slane %v390, 1
        %v393 = vsel %vm381, %v388, %v392
        %v395 = vshrl.u32 %v318, 16
        %v397 = vshll.u32 %v318, 16
        %v399 = vrot.slane %v397, 1
        %v400 = vor.u32 %v395, %v399
        %v402 = vshll.u32 %v366, 16
        %v404 = vrot.slane %v402, 1
        %v405 = vsel %vm381, %v400, %v404
        %v407 = vshrl.u32 %v319, 16
        %v409 = vshll.u32 %v319, 16
        %v411 = vrot.slane %v409, 1
        %v412 = vor.u32 %v407, %v411
        %v414 = vshll.u32 %v367, 16
        %v416 = vrot.slane %v414, 1
        %v417 = vsel %vm381, %v412, %v416
        %v419 = vshrl.u32 %v320, 16
        %v421 = vshll.u32 %v320, 16
        %v423 = vrot.slane %v421, 1
        %v424 = vor.u32 %v419, %v423
        %v426 = vshll.u32 %v368, 16
        %v428 = vrot.slane %v426, 1
        %v429 = vsel %vm381, %v424, %v428
        %v431 = vshrl.u32 %v321, 16
        %v433 = vshll.u32 %v321, 16
        %v435 = vrot.slane %v433, 1
        %v436 = vor.u32 %v431, %v435
        %v438 = vshll.u32 %v369, 16
        %v440 = vrot.slane %v438, 1
        %v441 = vsel %vm381, %v436, %v440
        %v443 = vshrl.u32 %v322, 16
        %v445 = vshll.u32 %v322, 16
        %v447 = vrot.slane %v445, 1
        %v448 = vor.u32 %v443, %v447
        %v450 = vshll.u32 %v370, 16
        %v452 = vrot.slane %v450, 1
        %v453 = vsel %vm381, %v448, %v452
        %v455 = vshrl.u32 %v323, 16
        %v457 = vshll.u32 %v323, 16
        %v459 = vrot.slane %v457, 1
        %v460 = vor.u32 %v455, %v459
        %v462 = vshll.u32 %v371, 16
        %v464 = vrot.slane %v462, 1
        %v465 = vsel %vm381, %v460, %v464
        %v467 = vshrl.u32 %v324, 16
        %v469 = vshll.u32 %v324, 16
        %v471 = vrot.slane %v469, 1
        %v472 = vor.u32 %v467, %v471
        %v474 = vshll.u32 %v372, 16
        %v476 = vrot.slane %v474, 1
        %v477 = vsel %vm381, %v472, %v476
        %v479 = vshrl.u32 %v325, 16
        %v481 = vshll.u32 %v325, 16
        %v483 = vrot.slane %v481, 1
        %v484 = vor.u32 %v479, %v483
        %v486 = vshll.u32 %v373, 16
        %v488 = vrot.slane %v486, 1
        %v489 = vsel %vm381, %v484, %v488
        %v491 = vshrl.u32 %v326, 16
        %v493 = vshll.u32 %v326, 16
        %v495 = vrot.slane %v493, 1
        %v496 = vor.u32 %v491, %v495
        %v498 = vshll.u32 %v374, 16
        %v500 = vrot.slane %v498, 1
        %v501 = vsel %vm381, %v496, %v500
        %v503 = vshrl.u32 %v327, 16
        %v505 = vshll.u32 %v327, 16
        %v507 = vrot.slane %v505, 1
        %v508 = vor.u32 %v503, %v507
        %v510 = vshll.u32 %v375, 16
        %v512 = vrot.slane %v510, 1
        %v513 = vsel %vm381, %v508, %v512
        %v515 = vshrl.u32 %v328, 16
        %v517 = vshll.u32 %v328, 16
        %v519 = vrot.slane %v517, 1
        %v520 = vor.u32 %v515, %v519
        %v522 = vshll.u32 %v376, 16
        %v524 = vrot.slane %v522, 1
        %v525 = vsel %vm381, %v520, %v524
        %v527 = vshrl.u32 %v329, 16
        %v529 = vshll.u32 %v329, 16
        %v531 = vrot.slane %v529, 1
        %v532 = vor.u32 %v527, %v531
        %v534 = vshll.u32 %v377, 16
        %v536 = vrot.slane %v534, 1
        %v537 = vsel %vm381, %v532, %v536
        %v539 = vshrl.u32 %v330, 16
        %v541 = vshll.u32 %v330, 16
        %v543 = vrot.slane %v541, 1
        %v544 = vor.u32 %v539, %v543
        %v546 = vshll.u32 %v378, 16
        %v548 = vrot.slane %v546, 1
        %v549 = vsel %vm381, %v544, %v548
        %v551 = vshrl.u32 %v331, 16
        %v553 = vshll.u32 %v331, 16
        %v555 = vrot.slane %v553, 1
        %v556 = vor.u32 %v551, %v555
        %v558 = vshll.u32 %v379, 16
        %v560 = vrot.slane %v558, 1
        %v561 = vsel %vm381, %v556, %v560
        %v563 = vshrl.u32 %v332, 16
        %v565 = vshll.u32 %v332, 16
        %v567 = vrot.slane %v565, 1
        %v568 = vor.u32 %v563, %v567
        %v570 = vshll.u32 %v380, 16
        %v572 = vrot.slane %v570, 1
        %v573 = vsel %vm381, %v568, %v572
        %574 = vrot.lane.b32.xlu0 %v393, 4
        %v575 = vpop.permute.xlu0 %574
        %576 = vrot.lane.b32.xlu0 %v405, 4
        %v577 = vpop.permute.xlu0 %576
        %578 = vrot.lane.b32.xlu0 %v417, 4
        %v579 = vpop.permute.xlu0 %578
        %580 = vrot.lane.b32.xlu0 %v429, 4
        %v581 = vpop.permute.xlu0 %580
        %582 = vrot.lane.b32.xlu0 %v441, 4
        %v583 = vpop.permute.xlu0 %582
        %584 = vrot.lane.b32.xlu0 %v453, 4
        %v585 = vpop.permute.xlu0 %584
        %586 = vrot.lane.b32.xlu0 %v465, 4
        %v587 = vpop.permute.xlu0 %586
        %588 = vrot.lane.b32.xlu0 %v477, 4
        %v589 = vpop.permute.xlu0 %588
        %590 = vrot.lane.b32.xlu0 %v489, 4
        %v591 = vpop.permute.xlu0 %590
        %592 = vrot.lane.b32.xlu0 %v501, 4
        %v593 = vpop.permute.xlu0 %592
        %594 = vrot.lane.b32.xlu0 %v513, 4
        %v595 = vpop.permute.xlu0 %594
        %596 = vrot.lane.b32.xlu0 %v525, 4
        %v597 = vpop.permute.xlu0 %596
        %598 = vrot.lane.b32.xlu0 %v537, 4
        %v599 = vpop.permute.xlu0 %598
        %600 = vrot.lane.b32.xlu0 %v549, 4
        %v601 = vpop.permute.xlu0 %600
        %602 = vrot.lane.b32.xlu0 %v561, 4
        %v603 = vpop.permute.xlu0 %602
        %604 = vrot.lane.b32.xlu0 %v573, 4
        %v605 = vpop.permute.xlu0 %604
        %vm606 = vcmask 1046528
        %v607 = vrot.slane %v317, 1
        %v608 = vrot.slane %v365, 1
        %v609 = vsel %vm606, %v607, %v608
        %v610 = vrot.slane %v318, 1
        %v611 = vrot.slane %v366, 1
        %v612 = vsel %vm606, %v610, %v611
        %v613 = vrot.slane %v319, 1
        %v614 = vrot.slane %v367, 1
        %v615 = vsel %vm606, %v613, %v614
        %v616 = vrot.slane %v320, 1
        %v617 = vrot.slane %v368, 1
        %v618 = vsel %vm606, %v616, %v617
        %v619 = vrot.slane %v321, 1
        %v620 = vrot.slane %v369, 1
        %v621 = vsel %vm606, %v619, %v620
        %v622 = vrot.slane %v322, 1
        %v623 = vrot.slane %v370, 1
        %v624 = vsel %vm606, %v622, %v623
        %v625 = vrot.slane %v323, 1
        %v626 = vrot.slane %v371, 1
        %v627 = vsel %vm606, %v625, %v626
        %v628 = vrot.slane %v324, 1
        %v629 = vrot.slane %v372, 1
        %v630 = vsel %vm606, %v628, %v629
        %v631 = vrot.slane %v325, 1
        %v632 = vrot.slane %v373, 1
        %v633 = vsel %vm606, %v631, %v632
        %v634 = vrot.slane %v326, 1
        %v635 = vrot.slane %v374, 1
        %v636 = vsel %vm606, %v634, %v635
        %v637 = vrot.slane %v327, 1
        %v638 = vrot.slane %v375, 1
        %v639 = vsel %vm606, %v637, %v638
        %v640 = vrot.slane %v328, 1
        %v641 = vrot.slane %v376, 1
        %v642 = vsel %vm606, %v640, %v641
        %v643 = vrot.slane %v329, 1
        %v644 = vrot.slane %v377, 1
        %v645 = vsel %vm606, %v643, %v644
        %v646 = vrot.slane %v330, 1
        %v647 = vrot.slane %v378, 1
        %v648 = vsel %vm606, %v646, %v647
        %v649 = vrot.slane %v331, 1
        %v650 = vrot.slane %v379, 1
        %v651 = vsel %vm606, %v649, %v650
        %v652 = vrot.slane %v332, 1
        %v653 = vrot.slane %v380, 1
        %v654 = vsel %vm606, %v652, %v653
        %655 = vrot.lane.b32.xlu0 %v609, 8
        %v656 = vpop.permute.xlu0 %655
        %657 = vrot.lane.b32.xlu0 %v612, 8
        %v658 = vpop.permute.xlu0 %657
        %659 = vrot.lane.b32.xlu0 %v615, 8
        %v660 = vpop.permute.xlu0 %659
        %661 = vrot.lane.b32.xlu0 %v618, 8
        %v662 = vpop.permute.xlu0 %661
        %663 = vrot.lane.b32.xlu0 %v621, 8
        %v664 = vpop.permute.xlu0 %663
        %665 = vrot.lane.b32.xlu0 %v624, 8
        %v666 = vpop.permute.xlu0 %665
        %667 = vrot.lane.b32.xlu0 %v627, 8
        %v668 = vpop.permute.xlu0 %667
        %669 = vrot.lane.b32.xlu0 %v630, 8
        %v670 = vpop.permute.xlu0 %669
        %671 = vrot.lane.b32.xlu0 %v633, 8
        %v672 = vpop.permute.xlu0 %671
        %673 = vrot.lane.b32.xlu0 %v636, 8
        %v674 = vpop.permute.xlu0 %673
        %675 = vrot.lane.b32.xlu0 %v639, 8
        %v676 = vpop.permute.xlu0 %675
        %677 = vrot.lane.b32.xlu0 %v642, 8
        %v678 = vpop.permute.xlu0 %677
        %679 = vrot.lane.b32.xlu0 %v645, 8
        %v680 = vpop.permute.xlu0 %679
        %681 = vrot.lane.b32.xlu0 %v648, 8
        %v682 = vpop.permute.xlu0 %681
        %683 = vrot.lane.b32.xlu0 %v651, 8
        %v684 = vpop.permute.xlu0 %683
        %685 = vrot.lane.b32.xlu0 %v654, 8
        %v686 = vpop.permute.xlu0 %685
        %v689 = vunpack.c.l.b16 %v247
        %v690 = vunpack.c.l.b16 %v248
        %v691 = vpack.c.b16 %v690, %v689
        %692 = vrot.lane.b32.xlu0 %v318, 12
        %v693 = vpop.permute.xlu0 %692
        %694 = vrot.lane.b32.xlu0 %v319, 12
        %v695 = vpop.permute.xlu0 %694
        %696 = vrot.lane.b32.xlu0 %v320, 12
        %v697 = vpop.permute.xlu0 %696
        %698 = vrot.lane.b32.xlu0 %v321, 12
        %v699 = vpop.permute.xlu0 %698
        %700 = vrot.lane.b32.xlu0 %v322, 12
        %v701 = vpop.permute.xlu0 %700
        %702 = vrot.lane.b32.xlu0 %v323, 12
        %v703 = vpop.permute.xlu0 %702
        %704 = vrot.lane.b32.xlu0 %v324, 12
        %v705 = vpop.permute.xlu0 %704
        %706 = vrot.lane.b32.xlu0 %v325, 12
        %v707 = vpop.permute.xlu0 %706
        %708 = vrot.lane.b32.xlu0 %v326, 12
        %v709 = vpop.permute.xlu0 %708
        %710 = vrot.lane.b32.xlu0 %v327, 12
        %v711 = vpop.permute.xlu0 %710
        %712 = vrot.lane.b32.xlu0 %v328, 12
        %v713 = vpop.permute.xlu0 %712
        %714 = vrot.lane.b32.xlu0 %v329, 12
        %v715 = vpop.permute.xlu0 %714
        %716 = vrot.lane.b32.xlu0 %v330, 12
        %v717 = vpop.permute.xlu0 %716
        %718 = vrot.lane.b32.xlu0 %v331, 12
        %v719 = vpop.permute.xlu0 %718
        %720 = vrot.lane.b32.xlu0 %v332, 12
        %v721 = vpop.permute.xlu0 %720
        %722 = vrot.lane.b32.xlu0 %v691, 12
        %v723 = vpop.permute.xlu0 %722
        %v725 = vunpack.c.l.b16 %v249
        %v726 = vpack.c.b16 %v725, %v725
        %v728 = vshrl.u32 %v691, 16
        %v730 = vshll.u32 %v691, 16
        %v732 = vrot.slane %v730, 1
        %v733 = vor.u32 %v728, %v732
        %v735 = vshll.u32 %v726, 16
        %v737 = vrot.slane %v735, 1
        %v738 = vsel %vm381, %v733, %v737
        %739 = vrot.lane.b32.xlu0 %v405, 16
        %v740 = vpop.permute.xlu0 %739
        %741 = vrot.lane.b32.xlu0 %v417, 16
        %v742 = vpop.permute.xlu0 %741
        %743 = vrot.lane.b32.xlu0 %v429, 16
        %v744 = vpop.permute.xlu0 %743
        %745 = vrot.lane.b32.xlu0 %v441, 16
        %v746 = vpop.permute.xlu0 %745
        %747 = vrot.lane.b32.xlu0 %v453, 16
        %v748 = vpop.permute.xlu0 %747
        %749 = vrot.lane.b32.xlu0 %v465, 16
        %v750 = vpop.permute.xlu0 %749
        %751 = vrot.lane.b32.xlu0 %v477, 16
        %v752 = vpop.permute.xlu0 %751
        %753 = vrot.lane.b32.xlu0 %v489, 16
        %v754 = vpop.permute.xlu0 %753
        %755 = vrot.lane.b32.xlu0 %v501, 16
        %v756 = vpop.permute.xlu0 %755
        %757 = vrot.lane.b32.xlu0 %v513, 16
        %v758 = vpop.permute.xlu0 %757
        %759 = vrot.lane.b32.xlu0 %v525, 16
        %v760 = vpop.permute.xlu0 %759
        %761 = vrot.lane.b32.xlu0 %v537, 16
        %v762 = vpop.permute.xlu0 %761
        %763 = vrot.lane.b32.xlu0 %v549, 16
        %v764 = vpop.permute.xlu0 %763
        %765 = vrot.lane.b32.xlu0 %v561, 16
        %v766 = vpop.permute.xlu0 %765
        %767 = vrot.lane.b32.xlu0 %v573, 16
        %v768 = vpop.permute.xlu0 %767
        %769 = vrot.lane.b32.xlu0 %v738, 16
        %v770 = vpop.permute.xlu0 %769
        %v771 = vrot.slane %v691, 1
        %v772 = vrot.slane %v726, 1
        %v773 = vsel %vm606, %v771, %v772
        %774 = vrot.lane.b32.xlu0 %v612, 20
        %v775 = vpop.permute.xlu0 %774
        %776 = vrot.lane.b32.xlu0 %v615, 20
        %v777 = vpop.permute.xlu0 %776
        %778 = vrot.lane.b32.xlu0 %v618, 20
        %v779 = vpop.permute.xlu0 %778
        %780 = vrot.lane.b32.xlu0 %v621, 20
        %v781 = vpop.permute.xlu0 %780
        %782 = vrot.lane.b32.xlu0 %v624, 20
        %v783 = vpop.permute.xlu0 %782
        %784 = vrot.lane.b32.xlu0 %v627, 20
        %v785 = vpop.permute.xlu0 %784
        %786 = vrot.lane.b32.xlu0 %v630, 20
        %v787 = vpop.permute.xlu0 %786
        %788 = vrot.lane.b32.xlu0 %v633, 20
        %v789 = vpop.permute.xlu0 %788
        %790 = vrot.lane.b32.xlu0 %v636, 20
        %v791 = vpop.permute.xlu0 %790
        %792 = vrot.lane.b32.xlu0 %v639, 20
        %v793 = vpop.permute.xlu0 %792
        %794 = vrot.lane.b32.xlu0 %v642, 20
        %v795 = vpop.permute.xlu0 %794
        %796 = vrot.lane.b32.xlu0 %v645, 20
        %v797 = vpop.permute.xlu0 %796
        %798 = vrot.lane.b32.xlu0 %v648, 20
        %v799 = vpop.permute.xlu0 %798
        %800 = vrot.lane.b32.xlu0 %v651, 20
        %v801 = vpop.permute.xlu0 %800
        %802 = vrot.lane.b32.xlu0 %v654, 20
        %v803 = vpop.permute.xlu0 %802
        %804 = vrot.lane.b32.xlu0 %v773, 20
        %v805 = vpop.permute.xlu0 %804
        %v808 = vunpack.c.l.b16 %v250
        %v809 = vunpack.c.l.b16 %v251
        %v810 = vpack.c.b16 %v809, %v808
        %811 = vrot.lane.b32.xlu0 %v319, 24
        %v812 = vpop.permute.xlu0 %811
        %813 = vrot.lane.b32.xlu0 %v320, 24
        %v814 = vpop.permute.xlu0 %813
        %815 = vrot.lane.b32.xlu0 %v321, 24
        %v816 = vpop.permute.xlu0 %815
        %817 = vrot.lane.b32.xlu0 %v322, 24
        %v818 = vpop.permute.xlu0 %817
        %819 = vrot.lane.b32.xlu0 %v323, 24
        %v820 = vpop.permute.xlu0 %819
        %821 = vrot.lane.b32.xlu0 %v324, 24
        %v822 = vpop.permute.xlu0 %821
        %823 = vrot.lane.b32.xlu0 %v325, 24
        %v824 = vpop.permute.xlu0 %823
        %825 = vrot.lane.b32.xlu0 %v326, 24
        %v826 = vpop.permute.xlu0 %825
        %827 = vrot.lane.b32.xlu0 %v327, 24
        %v828 = vpop.permute.xlu0 %827
        %829 = vrot.lane.b32.xlu0 %v328, 24
        %v830 = vpop.permute.xlu0 %829
        %831 = vrot.lane.b32.xlu0 %v329, 24
        %v832 = vpop.permute.xlu0 %831
        %833 = vrot.lane.b32.xlu0 %v330, 24
        %v834 = vpop.permute.xlu0 %833
        %835 = vrot.lane.b32.xlu0 %v331, 24
        %v836 = vpop.permute.xlu0 %835
        %837 = vrot.lane.b32.xlu0 %v332, 24
        %v838 = vpop.permute.xlu0 %837
        %839 = vrot.lane.b32.xlu0 %v691, 24
        %v840 = vpop.permute.xlu0 %839
        %841 = vrot.lane.b32.xlu0 %v810, 24
        %v842 = vpop.permute.xlu0 %841
        %v844 = vunpack.c.l.b16 %v252
        %v845 = vpack.c.b16 %v844, %v844
        %v847 = vshrl.u32 %v810, 16
        %v849 = vshll.u32 %v810, 16
        %v851 = vrot.slane %v849, 1
        %v852 = vor.u32 %v847, %v851
        %v854 = vshll.u32 %v845, 16
        %v856 = vrot.slane %v854, 1
        %v857 = vsel %vm381, %v852, %v856
        %858 = vrot.lane.b32.xlu0 %v417, 28
        %v859 = vpop.permute.xlu0 %858
        %860 = vrot.lane.b32.xlu0 %v429, 28
        %v861 = vpop.permute.xlu0 %860
        %862 = vrot.lane.b32.xlu0 %v441, 28
        %v863 = vpop.permute.xlu0 %862
        %864 = vrot.lane.b32.xlu0 %v453, 28
        %v865 = vpop.permute.xlu0 %864
        %866 = vrot.lane.b32.xlu0 %v465, 28
        %v867 = vpop.permute.xlu0 %866
        %868 = vrot.lane.b32.xlu0 %v477, 28
        %v869 = vpop.permute.xlu0 %868
        %870 = vrot.lane.b32.xlu0 %v489, 28
        %v871 = vpop.permute.xlu0 %870
        %872 = vrot.lane.b32.xlu0 %v501, 28
        %v873 = vpop.permute.xlu0 %872
        %874 = vrot.lane.b32.xlu0 %v513, 28
        %v875 = vpop.permute.xlu0 %874
        %876 = vrot.lane.b32.xlu0 %v525, 28
        %v877 = vpop.permute.xlu0 %876
        %878 = vrot.lane.b32.xlu0 %v537, 28
        %v879 = vpop.permute.xlu0 %878
        %880 = vrot.lane.b32.xlu0 %v549, 28
        %v881 = vpop.permute.xlu0 %880
        %882 = vrot.lane.b32.xlu0 %v561, 28
        %v883 = vpop.permute.xlu0 %882
        %884 = vrot.lane.b32.xlu0 %v573, 28
        %v885 = vpop.permute.xlu0 %884
        %886 = vrot.lane.b32.xlu0 %v738, 28
        %v887 = vpop.permute.xlu0 %886
        %888 = vrot.lane.b32.xlu0 %v857, 28
        %v889 = vpop.permute.xlu0 %888
        %v890 = vrot.slane %v810, 1
        %v891 = vrot.slane %v845, 1
        %v892 = vsel %vm606, %v890, %v891
        %893 = vrot.lane.b32.xlu0 %v615, 32
        %v894 = vpop.permute.xlu0 %893
        %895 = vrot.lane.b32.xlu0 %v618, 32
        %v896 = vpop.permute.xlu0 %895
        %897 = vrot.lane.b32.xlu0 %v621, 32
        %v898 = vpop.permute.xlu0 %897
        %899 = vrot.lane.b32.xlu0 %v624, 32
        %v900 = vpop.permute.xlu0 %899
        %901 = vrot.lane.b32.xlu0 %v627, 32
        %v902 = vpop.permute.xlu0 %901
        %903 = vrot.lane.b32.xlu0 %v630, 32
        %v904 = vpop.permute.xlu0 %903
        %905 = vrot.lane.b32.xlu0 %v633, 32
        %v906 = vpop.permute.xlu0 %905
        %907 = vrot.lane.b32.xlu0 %v636, 32
        %v908 = vpop.permute.xlu0 %907
        %909 = vrot.lane.b32.xlu0 %v639, 32
        %v910 = vpop.permute.xlu0 %909
        %911 = vrot.lane.b32.xlu0 %v642, 32
        %v912 = vpop.permute.xlu0 %911
        %913 = vrot.lane.b32.xlu0 %v645, 32
        %v914 = vpop.permute.xlu0 %913
        %915 = vrot.lane.b32.xlu0 %v648, 32
        %v916 = vpop.permute.xlu0 %915
        %917 = vrot.lane.b32.xlu0 %v651, 32
        %v918 = vpop.permute.xlu0 %917
        %919 = vrot.lane.b32.xlu0 %v654, 32
        %v920 = vpop.permute.xlu0 %919
        %921 = vrot.lane.b32.xlu0 %v773, 32
        %v922 = vpop.permute.xlu0 %921
        %923 = vrot.lane.b32.xlu0 %v892, 32
        %v924 = vpop.permute.xlu0 %923
        %vm925 = vcmask 31744
        %v927 = vsel %vm925, %v317, %v575
        %v929 = vsel %vm925, %v318, %v577
        %v931 = vsel %vm925, %v319, %v579
        %v933 = vsel %vm925, %v320, %v581
        %v935 = vsel %vm925, %v321, %v583
        %v937 = vsel %vm925, %v322, %v585
        %v939 = vsel %vm925, %v323, %v587
        %v941 = vsel %vm925, %v324, %v589
        %v943 = vsel %vm925, %v325, %v591
        %v945 = vsel %vm925, %v326, %v593
        %v947 = vsel %vm925, %v327, %v595
        %v949 = vsel %vm925, %v328, %v597
        %v951 = vsel %vm925, %v329, %v599
        %v953 = vsel %vm925, %v330, %v601
        %v955 = vsel %vm925, %v331, %v603
        %v957 = vsel %vm925, %v332, %v605
        %vm958 = vcmask 64512
        %v960 = vsel %vm958, %v927, %v656
        %v962 = vsel %vm958, %v929, %v658
        %v964 = vsel %vm958, %v931, %v660
        %v966 = vsel %vm958, %v933, %v662
        %v968 = vsel %vm958, %v935, %v664
        %v970 = vsel %vm958, %v937, %v666
        %v972 = vsel %vm958, %v939, %v668
        %v974 = vsel %vm958, %v941, %v670
        %v976 = vsel %vm958, %v943, %v672
        %v978 = vsel %vm958, %v945, %v674
        %v980 = vsel %vm958, %v947, %v676
        %v982 = vsel %vm958, %v949, %v678
        %v984 = vsel %vm958, %v951, %v680
        %v986 = vsel %vm958, %v953, %v682
        %v988 = vsel %vm958, %v955, %v684
        %v990 = vsel %vm958, %v957, %v686
        %vm991 = vcmask 97280
        %v993 = vsel %vm991, %v960, %v693
        %v995 = vsel %vm991, %v962, %v695
        %v997 = vsel %vm991, %v964, %v697
        %v999 = vsel %vm991, %v966, %v699
        %v1001 = vsel %vm991, %v968, %v701
        %v1003 = vsel %vm991, %v970, %v703
        %v1005 = vsel %vm991, %v972, %v705
        %v1007 = vsel %vm991, %v974, %v707
        %v1009 = vsel %vm991, %v976, %v709
        %v1011 = vsel %vm991, %v978, %v711
        %v1013 = vsel %vm991, %v980, %v713
        %v1015 = vsel %vm991, %v982, %v715
        %v1017 = vsel %vm991, %v984, %v717
        %v1019 = vsel %vm991, %v986, %v719
        %v1021 = vsel %vm991, %v988, %v721
        %v1023 = vsel %vm991, %v990, %v723
        %vm1024 = vcmask 130048
        %v1026 = vsel %vm1024, %v993, %v740
        %v1028 = vsel %vm1024, %v995, %v742
        %v1030 = vsel %vm1024, %v997, %v744
        %v1032 = vsel %vm1024, %v999, %v746
        %v1034 = vsel %vm1024, %v1001, %v748
        %v1036 = vsel %vm1024, %v1003, %v750
        %v1038 = vsel %vm1024, %v1005, %v752
        %v1040 = vsel %vm1024, %v1007, %v754
        %v1042 = vsel %vm1024, %v1009, %v756
        %v1044 = vsel %vm1024, %v1011, %v758
        %v1046 = vsel %vm1024, %v1013, %v760
        %v1048 = vsel %vm1024, %v1015, %v762
        %v1050 = vsel %vm1024, %v1017, %v764
        %v1052 = vsel %vm1024, %v1019, %v766
        %v1054 = vsel %vm1024, %v1021, %v768
        %v1056 = vsel %vm1024, %v1023, %v770
        %vm1057 = vcmask 162816
        %v1059 = vsel %vm1057, %v1026, %v775
        %v1061 = vsel %vm1057, %v1028, %v777
        %v1063 = vsel %vm1057, %v1030, %v779
        %v1065 = vsel %vm1057, %v1032, %v781
        %v1067 = vsel %vm1057, %v1034, %v783
        %v1069 = vsel %vm1057, %v1036, %v785
        %v1071 = vsel %vm1057, %v1038, %v787
        %v1073 = vsel %vm1057, %v1040, %v789
        %v1075 = vsel %vm1057, %v1042, %v791
        %v1077 = vsel %vm1057, %v1044, %v793
        %v1079 = vsel %vm1057, %v1046, %v795
        %v1081 = vsel %vm1057, %v1048, %v797
        %v1083 = vsel %vm1057, %v1050, %v799
        %v1085 = vsel %vm1057, %v1052, %v801
        %v1087 = vsel %vm1057, %v1054, %v803
        %v1089 = vsel %vm1057, %v1056, %v805
        %vm1090 = vcmask 195584
        %v1092 = vsel %vm1090, %v1059, %v812
        %v1094 = vsel %vm1090, %v1061, %v814
        %v1096 = vsel %vm1090, %v1063, %v816
        %v1098 = vsel %vm1090, %v1065, %v818
        %v1100 = vsel %vm1090, %v1067, %v820
        %v1102 = vsel %vm1090, %v1069, %v822
        %v1104 = vsel %vm1090, %v1071, %v824
        %v1106 = vsel %vm1090, %v1073, %v826
        %v1108 = vsel %vm1090, %v1075, %v828
        %v1110 = vsel %vm1090, %v1077, %v830
        %v1112 = vsel %vm1090, %v1079, %v832
        %v1114 = vsel %vm1090, %v1081, %v834
        %v1116 = vsel %vm1090, %v1083, %v836
        %v1118 = vsel %vm1090, %v1085, %v838
        %v1120 = vsel %vm1090, %v1087, %v840
        %v1122 = vsel %vm1090, %v1089, %v842
        %vm1123 = vcmask 228352
        %v1125 = vsel %vm1123, %v1092, %v859
        %v1127 = vsel %vm1123, %v1094, %v861
        %v1129 = vsel %vm1123, %v1096, %v863
        %v1131 = vsel %vm1123, %v1098, %v865
        %v1133 = vsel %vm1123, %v1100, %v867
        %v1135 = vsel %vm1123, %v1102, %v869
        %v1137 = vsel %vm1123, %v1104, %v871
        %v1139 = vsel %vm1123, %v1106, %v873
        %v1141 = vsel %vm1123, %v1108, %v875
        %v1143 = vsel %vm1123, %v1110, %v877
        %v1145 = vsel %vm1123, %v1112, %v879
        %v1147 = vsel %vm1123, %v1114, %v881
        %v1149 = vsel %vm1123, %v1116, %v883
        %v1151 = vsel %vm1123, %v1118, %v885
        %v1153 = vsel %vm1123, %v1120, %v887
        %v1155 = vsel %vm1123, %v1122, %v889
        %vm1156 = vcmask 261120
        %v1158 = vsel %vm1156, %v1125, %v894
        %v1160 = vsel %vm1156, %v1127, %v896
        %v1162 = vsel %vm1156, %v1129, %v898
        %v1164 = vsel %vm1156, %v1131, %v900
        %v1166 = vsel %vm1156, %v1133, %v902
        %v1168 = vsel %vm1156, %v1135, %v904
        %v1170 = vsel %vm1156, %v1137, %v906
        %v1172 = vsel %vm1156, %v1139, %v908
        %v1174 = vsel %vm1156, %v1141, %v910
        %v1176 = vsel %vm1156, %v1143, %v912
        %v1178 = vsel %vm1156, %v1145, %v914
        %v1180 = vsel %vm1156, %v1147, %v916
        %v1182 = vsel %vm1156, %v1149, %v918
        %v1184 = vsel %vm1156, %v1151, %v920
        %v1186 = vsel %vm1156, %v1153, %v922
        %v1188 = vsel %vm1156, %v1155, %v924
        %v1189 = vld [vmem:[%s1] sm:$0xf]
        %v1190 = vld [vmem:[%s1 + $0x4] sm:$0xf]
        %v1191 = vld [vmem:[%s1 + $0x8] sm:$0xf]
        %v1192 = vld [vmem:[%s1 + $0xc] sm:$0xf]
        %v1193 = vld [vmem:[%s1 + $0x10] sm:$0x3]
        %v1194 = vld [vmem:[%s2] sm:$0x1]
        %v1196 = vlaneseq
        %v1197 = vshrl.u32 %v1196, 7
        %v1198 = vsub.s32 0, %v1197
        %v1199 = vrot.slane %v1194, %v1198
        %v1206 = vunpack.c.l.b16 %v1189
        %v1207 = vunpack.c.l.b16 %v1190
        %v1208 = vunpack.c.l.b16 %v1191
        %v1209 = vunpack.c.l.b16 %v1192
        %v1210 = vunpack.c.l.b16 %v1193
        %v1211 = vpack.c.b16 %v1207, %v1206
        %v1212 = vpack.c.b16 %v1209, %v1208
        %v1213 = vpack.c.b16 %v1210, %v1210
        %vm1216 = vcmask 293888
        %v1217 = vsel %vm1216, %v1158, 0
        %v1219 = vsel %vm1216, %v1160, 0
        %v1221 = vsel %vm1216, %v1162, 0
        %v1223 = vsel %vm1216, %v1164, 0
        %v1225 = vsel %vm1216, %v1166, 0
        %v1227 = vsel %vm1216, %v1168, 0
        %v1229 = vsel %vm1216, %v1170, 0
        %v1231 = vsel %vm1216, %v1172, 0
        %v1233 = vsel %vm1216, %v1174, 0
        %v1235 = vsel %vm1216, %v1176, 0
        %v1237 = vsel %vm1216, %v1178, 0
        %v1239 = vsel %vm1216, %v1180, 0
        %v1241 = vsel %vm1216, %v1182, 0
        %v1243 = vsel %vm1216, %v1184, 0
        %v1245 = vsel %vm1216, %v1186, 0
        %v1247 = vsel %vm1216, %v1188, 0
        %vm1249 = vcmask 1041408
        %v1251 = vsel %vm1249, %v1213, 0
        %1253 = vmatprep.subr.bf16.mxu0 0
        %1254 = vmatpush1.bf16.msra.mxu0 %v1211
        %1255 = vmatprep.subr.bf16.mxu0 0
        %1256 = vmatpush1.bf16.msra.mxu0 %v1212
        %1257 = vmatprep.subr.bf16.mxu0 0
        %1258 = vmatpush1.bf16.msra.mxu0 %v1251
        %1259 = vmatprep.subr.bf16.mxu0 0
        %1260 = vmatpush1.bf16.msra.mxu0 0
        %1261 = vmatprep.subr.bf16.mxu0 0
        %1262 = vmatpush1.bf16.msra.mxu0 0
        %1263 = vmatprep.subr.bf16.mxu0 0
        %1264 = vmatpush1.bf16.msra.mxu0 0
        %1265 = vmatprep.subr.bf16.mxu0 0
        %1266 = vmatpush1.bf16.msra.mxu0 0
        %1267 = vmatprep.subr.bf16.mxu0 0
        %1268 = vmatpush1.bf16.msra.mxu0 0
        %1269 = vmatprep.subr.bf16.mxu0 0
        %1270 = vmatpush1.bf16.msra.mxu0 0
        %1271 = vmatprep.subr.bf16.mxu0 0
        %1272 = vmatpush1.bf16.msra.mxu0 0
        %1273 = vmatprep.subr.bf16.mxu0 0
        %1274 = vmatpush1.bf16.msra.mxu0 0
        %1275 = vmatprep.subr.bf16.mxu0 0
        %1276 = vmatpush1.bf16.msra.mxu0 0
        %1277 = vmatprep.subr.bf16.mxu0 0
        %1278 = vmatpush1.bf16.msra.mxu0 0
        %1279 = vmatprep.subr.bf16.mxu0 0
        %1280 = vmatpush1.bf16.msra.mxu0 0
        %1281 = vmatprep.subr.bf16.mxu0 0
        %1282 = vmatpush1.bf16.msra.mxu0 0
        %1283 = vmatprep.subr.bf16.mxu0 0
        %1284 = vmatpush1.bf16.msra.mxu0 0
        %1285 = vmatprep.mubr.bf16.mxu0 0
        %1286 = vmatmul.mubr.bf16.gmra.mrb[0].mxu0 %v1217
        %v1287 = vpop.f32.mrb[0].mxu0
        %v1288 = vadd.f32 %v1199, %v1287
        %v1289 = vpop.f32.mrb[0].mxu0
        %v1290 = vpop.f32.mrb[0].mxu0
        %v1291 = vadd.f32 %v1199, %v1290
        %v1292 = vpop.f32.mrb[0].mxu0
        %1293 = vmatprep.mubr.bf16.mxu0 0
        %1294 = vmatmul.mubr.bf16.gmra.mrb[0].mxu0 %v1219
        %v1295 = vpop.f32.mrb[0].mxu0
        %v1296 = vadd.f32 %v1199, %v1295
        %v1297 = vpop.f32.mrb[0].mxu0
        %v1298 = vpop.f32.mrb[0].mxu0
        %v1299 = vadd.f32 %v1199, %v1298
        %v1300 = vpop.f32.mrb[0].mxu0
        %1301 = vmatprep.mubr.bf16.mxu0 0
        %1302 = vmatmul.mubr.bf16.gmra.mrb[0].mxu0 %v1221
        %v1303 = vpop.f32.mrb[0].mxu0
        %v1304 = vadd.f32 %v1199, %v1303
        %v1305 = vpop.f32.mrb[0].mxu0
        %v1306 = vpop.f32.mrb[0].mxu0
        %v1307 = vadd.f32 %v1199, %v1306
        %v1308 = vpop.f32.mrb[0].mxu0
        %1309 = vmatprep.mubr.bf16.mxu0 0
        %1310 = vmatmul.mubr.bf16.gmra.mrb[0].mxu0 %v1223
        %v1311 = vpop.f32.mrb[0].mxu0
        %v1312 = vadd.f32 %v1199, %v1311
        %v1313 = vpop.f32.mrb[0].mxu0
        %v1314 = vpop.f32.mrb[0].mxu0
        %v1315 = vadd.f32 %v1199, %v1314
        %v1316 = vpop.f32.mrb[0].mxu0
        %1317 = vmatprep.mubr.bf16.mxu0 0
        %1318 = vmatmul.mubr.bf16.gmra.mrb[0].mxu0 %v1225
        %v1319 = vpop.f32.mrb[0].mxu0
        %v1320 = vadd.f32 %v1199, %v1319
        %v1321 = vpop.f32.mrb[0].mxu0
        %v1322 = vpop.f32.mrb[0].mxu0
        %v1323 = vadd.f32 %v1199, %v1322
        %v1324 = vpop.f32.mrb[0].mxu0
        %1325 = vmatprep.mubr.bf16.mxu0 0
        %1326 = vmatmul.mubr.bf16.gmra.mrb[0].mxu0 %v1227
        %v1327 = vpop.f32.mrb[0].mxu0
        %v1328 = vadd.f32 %v1199, %v1327
        %v1329 = vpop.f32.mrb[0].mxu0
        %v1330 = vpop.f32.mrb[0].mxu0
        %v1331 = vadd.f32 %v1199, %v1330
        %v1332 = vpop.f32.mrb[0].mxu0
        %1333 = vmatprep.mubr.bf16.mxu0 0
        %1334 = vmatmul.mubr.bf16.gmra.mrb[0].mxu0 %v1229
        %v1335 = vpop.f32.mrb[0].mxu0
        %v1336 = vadd.f32 %v1199, %v1335
        %v1337 = vpop.f32.mrb[0].mxu0
        %v1338 = vpop.f32.mrb[0].mxu0
        %v1339 = vadd.f32 %v1199, %v1338
        %v1340 = vpop.f32.mrb[0].mxu0
        %1341 = vmatprep.mubr.bf16.mxu0 0
        %1342 = vmatmul.mubr.bf16.gmra.mrb[0].mxu0 %v1231
        %v1343 = vpop.f32.mrb[0].mxu0
        %v1344 = vadd.f32 %v1199, %v1343
        %v1345 = vpop.f32.mrb[0].mxu0
        %v1346 = vpop.f32.mrb[0].mxu0
        %v1347 = vadd.f32 %v1199, %v1346
        %v1348 = vpop.f32.mrb[0].mxu0
        %1349 = vmatprep.mubr.bf16.mxu0 0
        %1350 = vmatmul.mubr.bf16.gmra.mrb[0].mxu0 %v1233
        %v1351 = vpop.f32.mrb[0].mxu0
        %v1352 = vadd.f32 %v1199, %v1351
        %v1353 = vpop.f32.mrb[0].mxu0
        %v1354 = vpop.f32.mrb[0].mxu0
        %v1355 = vadd.f32 %v1199, %v1354
        %v1356 = vpop.f32.mrb[0].mxu0
        %1357 = vmatprep.mubr.bf16.mxu0 0
        %1358 = vmatmul.mubr.bf16.gmra.mrb[0].mxu0 %v1235
        %v1359 = vpop.f32.mrb[0].mxu0
        %v1360 = vadd.f32 %v1199, %v1359
        %v1361 = vpop.f32.mrb[0].mxu0
        %v1362 = vpop.f32.mrb[0].mxu0
        %v1363 = vadd.f32 %v1199, %v1362
        %v1364 = vpop.f32.mrb[0].mxu0
        %1365 = vmatprep.mubr.bf16.mxu0 0
        %1366 = vmatmul.mubr.bf16.gmra.mrb[0].mxu0 %v1237
        %v1367 = vpop.f32.mrb[0].mxu0
        %v1368 = vadd.f32 %v1199, %v1367
        %v1369 = vpop.f32.mrb[0].mxu0
        %v1370 = vpop.f32.mrb[0].mxu0
        %v1371 = vadd.f32 %v1199, %v1370
        %v1372 = vpop.f32.mrb[0].mxu0
        %1373 = vmatprep.mubr.bf16.mxu0 0
        %1374 = vmatmul.mubr.bf16.gmra.mrb[0].mxu0 %v1239
        %v1375 = vpop.f32.mrb[0].mxu0
        %v1376 = vadd.f32 %v1199, %v1375
        %v1377 = vpop.f32.mrb[0].mxu0
        %v1378 = vpop.f32.mrb[0].mxu0
        %v1379 = vadd.f32 %v1199, %v1378
        %v1380 = vpop.f32.mrb[0].mxu0
        %1381 = vmatprep.mubr.bf16.mxu0 0
        %1382 = vmatmul.mubr.bf16.gmra.mrb[0].mxu0 %v1241
        %v1383 = vpop.f32.mrb[0].mxu0
        %v1384 = vadd.f32 %v1199, %v1383
        %v1385 = vpop.f32.mrb[0].mxu0
        %v1386 = vpop.f32.mrb[0].mxu0
        %v1387 = vadd.f32 %v1199, %v1386
        %v1388 = vpop.f32.mrb[0].mxu0
        %1389 = vmatprep.mubr.bf16.mxu0 0
        %1390 = vmatmul.mubr.bf16.gmra.mrb[0].mxu0 %v1243
        %v1391 = vpop.f32.mrb[0].mxu0
        %v1392 = vadd.f32 %v1199, %v1391
        %v1393 = vpop.f32.mrb[0].mxu0
        %v1394 = vpop.f32.mrb[0].mxu0
        %v1395 = vadd.f32 %v1199, %v1394
        %v1396 = vpop.f32.mrb[0].mxu0
        %1397 = vmatprep.mubr.bf16.mxu0 0
        %1398 = vmatmul.mubr.bf16.gmra.mrb[0].mxu0 %v1245
        %v1399 = vpop.f32.mrb[0].mxu0
        %v1400 = vadd.f32 %v1199, %v1399
        %v1401 = vpop.f32.mrb[0].mxu0
        %v1402 = vpop.f32.mrb[0].mxu0
        %v1403 = vadd.f32 %v1199, %v1402
        %v1404 = vpop.f32.mrb[0].mxu0
        %1405 = vmatprep.mubr.bf16.mxu0 0
        %1406 = vmatmul.mubr.bf16.gmra.mrb[0].mxu0 %v1247
        %v1407 = vpop.f32.mrb[0].mxu0
        %v1408 = vadd.f32 %v1199, %v1407
        %v1409 = vpop.f32.mrb[0].mxu0
        %v1410 = vpop.f32.mrb[0].mxu0
        %v1411 = vadd.f32 %v1199, %v1410
        %v1412 = vpop.f32.mrb[0].mxu0
        %1413 = vdwg.mxu0
        %v1414 = vmax.f32 %v1288, 0.0
        %v1415 = vmax.f32 %v1291, 0.0
        %v1416 = vmax.f32 %v1296, 0.0
        %v1417 = vmax.f32 %v1299, 0.0
        %v1418 = vmax.f32 %v1304, 0.0
        %v1419 = vmax.f32 %v1307, 0.0
        %v1420 = vmax.f32 %v1312, 0.0
        %v1421 = vmax.f32 %v1315, 0.0
        %v1422 = vmax.f32 %v1320, 0.0
        %v1423 = vmax.f32 %v1323, 0.0
        %v1424 = vmax.f32 %v1328, 0.0
        %v1425 = vmax.f32 %v1331, 0.0
        %v1426 = vmax.f32 %v1336, 0.0
        %v1427 = vmax.f32 %v1339, 0.0
        %v1428 = vmax.f32 %v1344, 0.0
        %v1429 = vmax.f32 %v1347, 0.0
        %v1430 = vmax.f32 %v1352, 0.0
        %v1431 = vmax.f32 %v1355, 0.0
        %v1432 = vmax.f32 %v1360, 0.0
        %v1433 = vmax.f32 %v1363, 0.0
        %v1434 = vmax.f32 %v1368, 0.0
        %v1435 = vmax.f32 %v1371, 0.0
        %v1436 = vmax.f32 %v1376, 0.0
        %v1437 = vmax.f32 %v1379, 0.0
        %v1438 = vmax.f32 %v1384, 0.0
        %v1439 = vmax.f32 %v1387, 0.0
        %v1440 = vmax.f32 %v1392, 0.0
        %v1441 = vmax.f32 %v1395, 0.0
        %v1442 = vmax.f32 %v1400, 0.0
        %v1443 = vmax.f32 %v1403, 0.0
        %v1444 = vmax.f32 %v1408, 0.0
        %v1445 = vmax.f32 %v1411, 0.0
        %1446 = vst [vmem:[%s187] sm:$0xff] %v1414
        %1447 = vst [vmem:[%s187 + $0x8] sm:$0xff] %v1415
        %1448 = vst [vmem:[%s187 + $0x10] sm:$0xff] %v1416
        %1449 = vst [vmem:[%s187 + $0x18] sm:$0xff] %v1417
        %1450 = vst [vmem:[%s187 + $0x20] sm:$0xff] %v1418
        %1451 = vst [vmem:[%s187 + $0x28] sm:$0xff] %v1419
        %1452 = vst [vmem:[%s187 + $0x30] sm:$0xff] %v1420
        %1453 = vst [vmem:[%s187 + $0x38] sm:$0xff] %v1421
        %1454 = vst [vmem:[%s187 + $0x40] sm:$0xff] %v1422
        %1455 = vst [vmem:[%s187 + $0x48] sm:$0xff] %v1423
        %1456 = vst [vmem:[%s187 + $0x50] sm:$0xff] %v1424
        %1457 = vst [vmem:[%s187 + $0x58] sm:$0xff] %v1425
        %1458 = vst [vmem:[%s187 + $0x60] sm:$0xff] %v1426
        %1459 = vst [vmem:[%s187 + $0x68] sm:$0xff] %v1427
        %1460 = vst [vmem:[%s187 + $0x70] sm:$0xff] %v1428
        %1461 = vst [vmem:[%s187 + $0x78] sm:$0xff] %v1429
        %1462 = vst [vmem:[%s187 + $0x80] sm:$0xff] %v1430
        %1463 = vst [vmem:[%s187 + $0x88] sm:$0xff] %v1431
        %1464 = vst [vmem:[%s187 + $0x90] sm:$0xff] %v1432
        %1465 = vst [vmem:[%s187 + $0x98] sm:$0xff] %v1433
        %1466 = vst [vmem:[%s187 + $0xa0] sm:$0xff] %v1434
        %1467 = vst [vmem:[%s187 + $0xa8] sm:$0xff] %v1435
        %1468 = vst [vmem:[%s187 + $0xb0] sm:$0xff] %v1436
        %1469 = vst [vmem:[%s187 + $0xb8] sm:$0xff] %v1437
        %1470 = vst [vmem:[%s187 + $0xc0] sm:$0xff] %v1438
        %1471 = vst [vmem:[%s187 + $0xc8] sm:$0xff] %v1439
        %1472 = vst [vmem:[%s187 + $0xd0] sm:$0xff] %v1440
        %1473 = vst [vmem:[%s187 + $0xd8] sm:$0xff] %v1441
        %1474 = vst [vmem:[%s187 + $0xe0] sm:$0xff] %v1442
        %1475 = vst [vmem:[%s187 + $0xe8] sm:$0xff] %v1443
        %1476 = vst [vmem:[%s187 + $0xf0] sm:$0xff] %v1444
        %1477 = vst [vmem:[%s187 + $0xf8] sm:$0xff] %v1445
        %s1478 = sand.u32 %s109, 1
        %s1479 = scalar_lea.sflag [#allocation3], %s1478
        %s1480 = sand.u32 %s109, 1
        %s1481 = smul.addr %s1480, 256
        %s1482 = scalar_lea.vmem [#allocation2], %s1481
        // Predicated region
        $region33: #{tpu_custom_call.1} parent=31 // pred_check
          %p1483 = pneg %p119
        $region34: #{tpu_custom_call.1} parent=31 // pred_check_branch
          %1485 = sbr.rel (%p1483) target = $region36
        $region35: #{tpu_custom_call.1} parent=31 // pred_region
          %s1486 = smul.u32 16, %s22
          %s1488 = ssub.s32 4096, 4096
          %1489 = vsyncadd %s1479, %s1488
          %s1490 = smul.addr %s1486, 2
          %s1491 = smul.addr %s21, 32
          %s1492 = sadd.s32 %s1490, %s1491
          %s1493 = smul.addr %s1492, 128
          %s1494 = scalar_lea.hbm %s3, %s1493
          %s1495 = sshll.u32 %s1482, 4
          %s1496 = int_to_ptr.vmem [resolvable:$true] %s1495
          %1501 = dma.vmem_to_hbm [thread:$0]  %s1496, 4096, %s1494, %s1479, 128, 128, 8
        $region36: #{tpu_custom_call.1} parent=31 // pred_fallthru
          _
      $region32: #{tpu_custom_call.1} parent=5 // pred_fallthru
        _
      %p1502 = scmp.le.s32.totalorder 2, %s12
      // Predicated region
      $region37: #{tpu_custom_call.1} parent=5 // pred_check
        %p1503 = pneg %p1502
      $region38: #{tpu_custom_call.1} parent=5 // pred_check_branch
        %1505 = sbr.rel (%p1503) target = $region40
      $region39: #{tpu_custom_call.1} parent=5 // pred_region
        %s1506 = ssub.s32 %s12, 2
        // Predicated region
        $region41: #{tpu_custom_call.1} parent=39 // pred_check
          %p1507 = pneg %p125
        $region42: #{tpu_custom_call.1} parent=39 // pred_check_branch
          %1509 = sbr.rel (%p1507) target = $region44
        $region43: #{tpu_custom_call.1} parent=39 // pred_region
          %s1510 = sand.u32 %s110, 1
          %s1511 = scalar_lea.sflag [#allocation3], %s1510
          %s1512 = sand.u32 %s110, 1
          %s1513 = smul.addr %s1512, 256
          %s1514 = scalar_lea.vmem [#allocation2], %s1513
          %1515 = dma.done %s1511, 4096
        $region44: #{tpu_custom_call.1} parent=39 // pred_fallthru
          _
      $region40: #{tpu_custom_call.1} parent=5 // pred_fallthru
        _
    $region6: #{tpu_custom_call.1} parent=1 // loop_footer
      %s16 = sadd.s32 1, %s12
    $region7: #{tpu_custom_call.1} parent=1 // loop_footer_branch
      %11 = sbr.rel target = $region3
    $region8: #{tpu_custom_call.1} parent=1 // loop_exit
      _
    %1516 = vsyncpa [#allocation3], 1
    %s1517 = scalar_lea.sflag [#allocation3], 1
    %1518 = vsyncpa %s1517, 1

</llo_original>
